<compile_context>
chip_gen: v7x
topology: tpu7x:2x2x1
jax: 0.10.0
libtpu: 0.0.40
codegen_flags: <defaults>
</compile_context>

<pallas_src>
import functools
from collections import defaultdict

import jax
import jax.numpy as jnp
from jax.experimental import pallas as pl
from jax.experimental.pallas import tpu as pltpu

CORE_LOSS_KEY = "core_loss"

LANE = 128          # vreg lane width
SUB = 8             # f32 sublanes per vreg
SUB_ALIGN = 32      # sublane alignment that satisfies f32 (8), bf16 (16) and int8 (32) tiling
N_STATS = 6         # focal_sum, sum(p*t), sum(p), sum(t), intersection, union


# --------------------------------------------------------------------------------------
# Pallas kernel: per-(object, mask-hypothesis) reduction statistics
# --------------------------------------------------------------------------------------
def _fold_sublanes(v):
    """(..., TS, 128) -> (..., 8, 128) using only vreg-aligned slices + elementwise (VPU) adds."""
    ts = v.shape[-2]
    acc = v[..., 0:SUB, :]
    for j in range(1, ts // SUB):
        acc = acc + v[..., j * SUB:(j + 1) * SUB, :]
    return acc


def _mask_stats_kernel(src_ref, tgt_ref, out_ref, *, alpha, gamma):
    """Accumulate six statistics over one spatial chunk.

    src_ref: (M, TS, 128) logits          out_ref: (6*M, 8, 128) resident accumulator slab
    tgt_ref: (TS, 128) int8 binary target (same output block for every spatial chunk k)
    """
    k = pl.program_id(1)
    M = src_ref.shape[0]

    @pl.when(k == 0)
    def _():
        out_ref[...] = jnp.zeros_like(out_ref)

    x = src_ref[...].astype(jnp.float32)       # (M, TS, 128)
    t = tgt_ref[...].astype(jnp.float32)       # (TS, 128) -- broadcasts over the M hypotheses

    # Fused numerically-stable sigmoid + binary_cross_entropy_with_logits:
    #   e = exp(-|x|); sigmoid = 1/(1+e) (x>=0) or e/(1+e) (x<0); ce = max(x,0) - x*t + log1p(e)
    # -> one exp, one log1p, one reciprocal per element (vs exp+recip+exp+log1p before).
    e = jnp.exp(-jnp.abs(x))
    r = 1.0 / (1.0 + e)
    p = jnp.where(x >= 0.0, r, e * r)
    ce = jnp.maximum(x, 0.0) - x * t + jnp.log1p(e)

    p_t = p * t + (1.0 - p) * (1.0 - t)
    one_m = 1.0 - p_t
    g = float(gamma)
    if g == 0.0:
        mod = jnp.ones_like(one_m)
    elif g.is_integer() and g > 0:
        mod = one_m
        for _ in range(int(g) - 1):            # integer-gamma unrolling (gamma=2 -> one mul)
            mod = mod * one_m
    else:
        mod = one_m ** g
    focal = ce * mod
    if alpha >= 0:
        focal = (alpha * t + (1.0 - alpha) * (1.0 - t)) * focal

    pred_pos = x > 0.0
    tgt_pos = t > 0.0
    inter = jnp.logical_and(pred_pos, tgt_pos).astype(jnp.float32)
    union = jnp.logical_or(pred_pos, tgt_pos).astype(jnp.float32)

    # Pure-VPU accumulation into the resident (6*M, 8, 128) output slab; the cross-lane
    # reduce of this tiny slab happens once, outside the kernel.
    out_ref[0 * M:1 * M] += _fold_sublanes(focal)       # 0: focal loss sum
    out_ref[1 * M:2 * M] += _fold_sublanes(p * t)       # 1: sum(sigmoid * target)
    out_ref[2 * M:3 * M] += _fold_sublanes(p)           # 2: sum(sigmoid)
    out_ref[3 * M:4 * M] += _fold_sublanes(t)           # 3: sum(target)   ((8,128) bcast over M)
    out_ref[4 * M:5 * M] += _fold_sublanes(inter)       # 4: area of intersection
    out_ref[5 * M:6 * M] += _fold_sublanes(union)       # 5: area of union


def _spatial_geometry(hw, max_tile_s=512):
    """Choose the padded (S, tile_s) sublane/lane folding for a flattened mask of hw pixels."""
    s = pl.cdiv(hw, LANE)
    s = pl.cdiv(s, SUB_ALIGN) * SUB_ALIGN            # align sublanes for int8/bf16/f32 tiling
    tile_s = min(max_tile_s, s)
    s = pl.cdiv(s, tile_s) * tile_s                  # whole number of spatial chunks
    return s, tile_s


def prepare_targets(targets, *, max_tile_s=512):
    """targets: (N, H, W) binary GT masks -> ((N, S, 128) int8 slab, (hw, S, tile_s))."""
    N, H, W = targets.shape
    hw = H * W
    S, tile_s = _spatial_geometry(hw, max_tile_s)
    # Binary masks -> int8 storage is exact and cuts target HBM bytes 4x vs f32.
    # TODO(synk): soft (non-binary) float targets would need a float target path.
    t = targets.reshape(N, hw).astype(jnp.int8)
    if S * LANE != hw:
        t = jnp.pad(t, ((0, 0), (0, S * LANE - hw)))
    return t.reshape(N, S, LANE), (hw, S, tile_s)


def mask_pair_stats(src_masks, tgt_slab, geom, *, alpha, gamma):
    """Per-(object, mask-hypothesis) reduction statistics.

    src_masks: (N, M, H, W) logits (any float dtype), tgt_slab: (N, S, 128) int8.
    Returns (N, M, 6) f32: [focal_sum, sum(p*t), sum(p), sum(t), intersection, union].
    """
    N, M, H, W = src_masks.shape
    hw, S, tile_s = geom
    assert H * W == hw, "prediction and target spatial sizes must match"

    src = src_masks.reshape(N, M, hw)
    if S * LANE != hw:
        # Pad with a large negative logit: sigmoid/focal/IoU contributions of the padding
        # underflow to ~1e-17 per element, so no explicit validity mask is needed.
        src = jnp.pad(src, ((0, 0), (0, 0), (0, S * LANE - hw)), constant_values=-40.0)
    src = src.reshape(N, M, S, LANE)

    kernel = functools.partial(_mask_stats_kernel, alpha=alpha, gamma=gamma)
    slab = pl.pallas_call(
        kernel,
        out_shape=jax.ShapeDtypeStruct((N, N_STATS * M, SUB, LANE), jnp.float32),
        grid_spec=pltpu.PrefetchScalarGridSpec(
            num_scalar_prefetch=0,
            grid=(N, S // tile_s),
            in_specs=[
                pl.BlockSpec((None, M, tile_s, LANE), lambda n, k: (n, 0, k, 0)),
                pl.BlockSpec((None, tile_s, LANE), lambda n, k: (n, k, 0)),
            ],
            out_specs=pl.BlockSpec((None, N_STATS * M, SUB, LANE),
                                   lambda n, k: (n, 0, 0, 0)),
        ),
        compiler_params=pltpu.CompilerParams(
            dimension_semantics=("parallel", "arbitrary"),
        ),
    )(src, tgt_slab)

    # Tiny final cross-lane/sublane reduction in plain JAX (outside the hot loop).
    stats = slab.reshape(N, N_STATS, M, SUB * LANE).sum(-1)      # (N, 6, M)
    return jnp.transpose(stats, (0, 2, 1))                       # (N, M, 6)


# --------------------------------------------------------------------------------------
# Module port (forward-pass semantics of MultiStepMultiMasksAndIous)
# --------------------------------------------------------------------------------------
class MultiStepMultiMasksAndIous:
    def __init__(self, weight_dict, focal_alpha=0.25, focal_gamma=2.0,
                 supervise_all_iou=False, iou_use_l1_loss=False,
                 pred_obj_scores=False, focal_gamma_obj_score=0.0,
                 focal_alpha_obj_score=-1):
        self.weight_dict = dict(weight_dict)
        self.focal_alpha = focal_alpha
        self.focal_gamma = focal_gamma
        assert "loss_mask" in self.weight_dict
        assert "loss_dice" in self.weight_dict
        assert "loss_iou" in self.weight_dict
        self.weight_dict.setdefault("loss_class", 0.0)
        self.weight_dict.setdefault("loss_kd_output", 0.0)
        self.weight_dict.setdefault("loss_kd_intermediate", 0.0)
        self.supervise_all_iou = supervise_all_iou
        self.iou_use_l1_loss = iou_use_l1_loss
        self.pred_obj_scores = pred_obj_scores
        self.focal_gamma_obj_score = focal_gamma_obj_score
        self.focal_alpha_obj_score = focal_alpha_obj_score
        # TODO(synk): KD (teacher/student) branches not exercised (use_kd_* default False).

    def forward(self, outs_batch, targets_batch):
        assert len(outs_batch) == targets_batch.shape[0]
        num_objects = max(float(targets_batch.shape[1]), 1.0)  # world_size == 1
        losses = defaultdict(lambda: jnp.array(0.0, jnp.float32))
        for outs, targets in zip(outs_batch, targets_batch):
            cur = self._forward(outs, targets, num_objects)
            for k, v in cur.items():
                losses[k] = losses[k] + v
        return dict(losses)

    def _forward(self, outputs, targets, num_objects):
        # targets: (N, H, W) binary GT masks for this batch item
        src_masks_list = outputs["multistep_pred_multimasks_high_res"]
        ious_list = outputs["multistep_pred_ious"]
        obj_list = outputs["multistep_object_score_logits"]
        # De-duplicated int8 target slab is built once per batch item and reused for all steps.
        tgt_slab, geom = prepare_targets(targets)
        losses = {
            "loss_mask": jnp.array(0.0, jnp.float32),
            "loss_dice": jnp.array(0.0, jnp.float32),
            "loss_iou": jnp.array(0.0, jnp.float32),
            "loss_class": jnp.array(0.0, jnp.float32),
            "loss_kd_output": jnp.array(0.0, jnp.float32),
            "loss_kd_intermediate": jnp.array(0.0, jnp.float32),
        }
        for src_masks, ious, obj_logits in zip(src_masks_list, ious_list, obj_list):
            self._update_losses(losses, src_masks, tgt_slab, geom, ious,
                                num_objects, obj_logits)
        losses[CORE_LOSS_KEY] = self.reduce_loss(losses)
        return losses

    def _update_losses(self, losses, src_masks, tgt_slab, geom, ious,
                       num_objects, object_score_logits):
        N, M, H, W = src_masks.shape
        HW = H * W

        stats = mask_pair_stats(src_masks, tgt_slab, geom,
                                alpha=self.focal_alpha, gamma=self.focal_gamma)   # (N, M, 6)
        focal_sum = stats[..., 0]
        sig_t_sum = stats[..., 1]
        sig_sum = stats[..., 2]
        t_sum = stats[..., 3]
        inter = stats[..., 4]
        union = stats[..., 5]

        loss_multimask = focal_sum / HW / num_objects                       # (N, M)
        loss_multidice = (1.0 - (2.0 * sig_t_sum + 1.0)
                          / (sig_sum + t_sum + 1.0)) / num_objects          # (N, M)
        actual_ious = inter / jnp.maximum(union, 1.0)
        if self.iou_use_l1_loss:
            loss_multiiou = jnp.abs(ious - actual_ious) / num_objects
        else:
            loss_multiiou = (ious - actual_ious) ** 2 / num_objects         # (N, M)

        if not self.pred_obj_scores:
            loss_class = jnp.array(0.0, jnp.float32)
            target_obj = jnp.ones((N, 1), jnp.float32)
        else:
            # tiny (N, 1) tensor -> plain JAX focal loss
            target_obj = (t_sum[:, :1] > 0).astype(jnp.float32)
            x = object_score_logits.astype(jnp.float32)
            t = target_obj
            p = jax.nn.sigmoid(x)
            ce = jnp.maximum(x, 0.0) - x * t + jnp.log1p(jnp.exp(-jnp.abs(x)))
            p_t = p * t + (1 - p) * (1 - t)
            fl = ce * (1 - p_t) ** self.focal_gamma_obj_score
            if self.focal_alpha_obj_score >= 0:
                fl = (self.focal_alpha_obj_score * t
                      + (1 - self.focal_alpha_obj_score) * (1 - t)) * fl
            loss_class = fl.mean(axis=1).sum() / num_objects

        if M > 1:
            combo = (loss_multimask * self.weight_dict["loss_mask"]
                     + loss_multidice * self.weight_dict["loss_dice"])
            best = jnp.argmin(combo, axis=-1)
            bi = jnp.arange(N)
            loss_mask = loss_multimask[bi, best][:, None]
            loss_dice = loss_multidice[bi, best][:, None]
            if self.supervise_all_iou:
                loss_iou = loss_multiiou.mean(axis=-1)[:, None]
            else:
                loss_iou = loss_multiiou[bi, best][:, None]
        else:
            loss_mask, loss_dice, loss_iou = loss_multimask, loss_multidice, loss_multiiou

        loss_mask = loss_mask * target_obj
        loss_dice = loss_dice * target_obj
        loss_iou = loss_iou * target_obj

        losses["loss_mask"] = losses["loss_mask"] + loss_mask.sum()
        losses["loss_dice"] = losses["loss_dice"] + loss_dice.sum()
        losses["loss_iou"] = losses["loss_iou"] + loss_iou.sum()
        losses["loss_class"] = losses["loss_class"] + loss_class

    def reduce_loss(self, losses):
        reduced = jnp.array(0.0, jnp.float32)
        for k, w in self.weight_dict.items():
            if k not in losses:
                raise ValueError(f"doesn't compute {k}")
            if w != 0:
                reduced = reduced + losses[k] * w
        return reduced


# --------------------------------------------------------------------------------------
# Pure-JAX reference (for a silent sanity check)
# --------------------------------------------------------------------------------------
def _ref_step(src, tgt4, ious, num_objects, wd, alpha, gamma):
    N, M, H, W = src.shape
    x = src.reshape(N, M, -1).astype(jnp.float32)
    t = jnp.broadcast_to(tgt4, src.shape).reshape(N, M, -1).astype(jnp.float32)
    p = jax.nn.sigmoid(x)
    ce = jnp.maximum(x, 0) - x * t + jnp.log1p(jnp.exp(-jnp.abs(x)))
    pt = p * t + (1 - p) * (1 - t)
    focal = (alpha * t + (1 - alpha) * (1 - t)) * ce * (1 - pt) ** gamma
    lm = focal.mean(-1) / num_objects
    ld = (1 - (2 * (p * t).sum(-1) + 1) / (p.sum(-1) + t.sum(-1) + 1)) / num_objects
    pi, gi = x > 0, t > 0
    ai = (pi & gi).sum(-1).astype(jnp.float32)
    au = (pi | gi).sum(-1).astype(jnp.float32)
    li = (ious - ai / jnp.maximum(au, 1.0)) ** 2 / num_objects
    combo = lm * wd["loss_mask"] + ld * wd["loss_dice"]
    b = jnp.argmin(combo, -1)
    bi = jnp.arange(N)
    return lm[bi, b].sum(), ld[bi, b].sum(), li[bi, b].sum()


# --------------------------------------------------------------------------------------
if __name__ == "__main__":
    B, N, M, H, W, STEPS = 2, 2, 3, 16, 16, 2
    key = jax.random.PRNGKey(0)
    k_t, k_m, k_i, k_o = jax.random.split(key, 4)

    targets_batch = (jax.random.uniform(k_t, (B, N, H, W)) > 0.5).astype(jnp.float32)
    masks = jax.random.normal(k_m, (B, STEPS, N, M, H, W), jnp.float32) * 2.0
    ious = jax.random.uniform(k_i, (B, STEPS, N, M), jnp.float32)
    obj = jax.random.normal(k_o, (B, STEPS, N, 1), jnp.float32)

    outs_batch = []
    for b in range(B):
        outs_batch.append({
            "multistep_pred_multimasks_high_res": [masks[b, s] for s in range(STEPS)],
            "multistep_pred_ious": [ious[b, s] for s in range(STEPS)],
            "multistep_object_score_logits": [obj[b, s] for s in range(STEPS)],
        })

    weight_dict = {"loss_mask": 20.0, "loss_dice": 1.0, "loss_iou": 1.0, "loss_class": 1.0}
    loss_fn = MultiStepMultiMasksAndIous(weight_dict, focal_alpha=0.25, focal_gamma=2.0)

    losses = loss_fn.forward(outs_batch, targets_batch)
    jax.block_until_ready(losses[CORE_LOSS_KEY])

    # silent reference check
    num_objects = float(N)
    ref = {"loss_mask": 0.0, "loss_dice": 0.0, "loss_iou": 0.0}
    for b in range(B):
        tgt4 = targets_batch[b][:, None]
        for s in range(STEPS):
            lm, ld, li = _ref_step(masks[b, s], tgt4, ious[b, s], num_objects,
                                   weight_dict, 0.25, 2.0)
            ref["loss_mask"] += lm
            ref["loss_dice"] += ld
            ref["loss_iou"] += li
    ref_core = (ref["loss_mask"] * weight_dict["loss_mask"]
                + ref["loss_dice"] * weight_dict["loss_dice"]
                + ref["loss_iou"] * weight_dict["loss_iou"])
    assert jnp.allclose(losses[CORE_LOSS_KEY], ref_core, rtol=1e-4, atol=1e-4), (
        losses[CORE_LOSS_KEY], ref_core)

    print("KERNEL_OK")
</pallas_src>

<mosaic_0001>
module attributes {stable_mosaic.version = 11 : i64} {
  func.func @_mask_stats_kernel(%arg0: i32, %arg1: i32, %arg2: memref<1x3x32x128xf32, #tpu.memory_space<vmem>>, %arg3: memref<1x32x128xi8, #tpu.memory_space<vmem>>, %arg4: memref<1x18x8x128xf32, #tpu.memory_space<vmem>>) attributes {dimension_semantics = [#tpu.dimension_semantics<parallel>, #tpu.dimension_semantics<arbitrary>], iteration_bounds = array<i64: 2, 1>, scalar_prefetch = 0 : i64, scratch_operands = 0 : i64, tpu.core_type = #tpu.core_type<tc>, window_params = [{transform_indices = @transform_0, window_bounds = array<i64: 1, 3, 32, 128>}, {transform_indices = @transform_1, window_bounds = array<i64: 1, 32, 128>}, {transform_indices = @transform_2, window_bounds = array<i64: 1, 18, 8, 128>}]} {
    %c0_i32 = arith.constant 0 : i32
    %0 = arith.cmpi eq, %arg1, %c0_i32 : i32
    %1 = arith.extui %0 : i1 to i32
    %c0_i32_0 = arith.constant 0 : i32
    %2 = arith.cmpi ne, %1, %c0_i32_0 : i32
    scf.if %2 {
      %cst_62 = arith.constant 0.000000e+00 : f32
      %150 = vector.broadcast %cst_62 : f32 to vector<18x8x128xf32>
      %c0_63 = arith.constant 0 : index
      %c0_64 = arith.constant 0 : index
      %c0_65 = arith.constant 0 : index
      %c0_66 = arith.constant 0 : index
      %151 = vector.load %arg4[%c0_63, %c0_64, %c0_65, %c0_66] : memref<1x18x8x128xf32, #tpu.memory_space<vmem>>, vector<1x18x8x128xf32>
      %152 = vector.shape_cast %151 : vector<1x18x8x128xf32> to vector<18x8x128xf32>
      %153 = vector.shape_cast %150 : vector<18x8x128xf32> to vector<1x18x8x128xf32>
      tpu.vector_store %arg4[%c0_63, %c0_64, %c0_65, %c0_66], %153 {strides = array<i32>} : memref<1x18x8x128xf32, #tpu.memory_space<vmem>>, vector<1x18x8x128xf32>,
    } else {
    }
    %c0 = arith.constant 0 : index
    %c0_1 = arith.constant 0 : index
    %c0_2 = arith.constant 0 : index
    %c0_3 = arith.constant 0 : index
    %3 = vector.load %arg2[%c0, %c0_1, %c0_2, %c0_3] : memref<1x3x32x128xf32, #tpu.memory_space<vmem>>, vector<1x3x32x128xf32>
    %4 = vector.shape_cast %3 : vector<1x3x32x128xf32> to vector<3x32x128xf32>
    %c0_4 = arith.constant 0 : index
    %c0_5 = arith.constant 0 : index
    %c0_6 = arith.constant 0 : index
    %5 = vector.load %arg3[%c0_4, %c0_5, %c0_6] : memref<1x32x128xi8, #tpu.memory_space<vmem>>, vector<1x32x128xi8>
    %6 = vector.shape_cast %5 : vector<1x32x128xi8> to vector<32x128xi8>
    %7 = arith.sitofp %6 : vector<32x128xi8> to vector<32x128xf32>
    %8 = math.absf %4 : vector<3x32x128xf32>
    %cst = arith.constant 0.000000e+00 : f32
    %9 = vector.broadcast %cst : f32 to vector<3x32x128xf32>
    %10 = arith.subf %9, %8 : vector<3x32x128xf32>
    %11 = math.exp %10 : vector<3x32x128xf32>
    %cst_7 = arith.constant 1.000000e+00 : f32
    %12 = vector.broadcast %cst_7 : f32 to vector<3x32x128xf32>
    %13 = arith.addf %12, %11 : vector<3x32x128xf32>
    %cst_8 = arith.constant 1.000000e+00 : f32
    %14 = vector.broadcast %cst_8 : f32 to vector<3x32x128xf32>
    %15 = arith.divf %14, %13 : vector<3x32x128xf32>
    %cst_9 = arith.constant 0.000000e+00 : f32
    %16 = vector.broadcast %cst_9 : f32 to vector<3x32x128xf32>
    %17 = arith.cmpf oge, %4, %16 : vector<3x32x128xf32>
    %18 = arith.mulf %11, %15 : vector<3x32x128xf32>
    %19 = arith.select %17, %15, %18 : vector<3x32x128xi1>, vector<3x32x128xf32>
    %cst_10 = arith.constant 0.000000e+00 : f32
    %20 = vector.broadcast %cst_10 : f32 to vector<3x32x128xf32>
    %21 = arith.maximumf %4, %20 : vector<3x32x128xf32>
    %22 = vector.shape_cast %7 : vector<32x128xf32> to vector<1x32x128xf32>
    %23 = vector.broadcast %22 : vector<1x32x128xf32> to vector<3x32x128xf32>
    %24 = arith.mulf %4, %23 : vector<3x32x128xf32>
    %25 = arith.subf %21, %24 : vector<3x32x128xf32>
    %26 = math.log1p %11 : vector<3x32x128xf32>
    %27 = arith.addf %25, %26 : vector<3x32x128xf32>
    %28 = vector.shape_cast %7 : vector<32x128xf32> to vector<1x32x128xf32>
    %29 = vector.broadcast %28 : vector<1x32x128xf32> to vector<3x32x128xf32>
    %30 = arith.mulf %19, %29 : vector<3x32x128xf32>
    %cst_11 = arith.constant 1.000000e+00 : f32
    %31 = vector.broadcast %cst_11 : f32 to vector<3x32x128xf32>
    %32 = arith.subf %31, %19 : vector<3x32x128xf32>
    %cst_12 = arith.constant 1.000000e+00 : f32
    %33 = vector.broadcast %cst_12 : f32 to vector<32x128xf32>
    %34 = arith.subf %33, %7 : vector<32x128xf32>
    %35 = vector.shape_cast %34 : vector<32x128xf32> to vector<1x32x128xf32>
    %36 = vector.broadcast %35 : vector<1x32x128xf32> to vector<3x32x128xf32>
    %37 = arith.mulf %32, %36 : vector<3x32x128xf32>
    %38 = arith.addf %30, %37 : vector<3x32x128xf32>
    %cst_13 = arith.constant 1.000000e+00 : f32
    %39 = vector.broadcast %cst_13 : f32 to vector<3x32x128xf32>
    %40 = arith.subf %39, %38 : vector<3x32x128xf32>
    %41 = arith.mulf %40, %40 : vector<3x32x128xf32>
    %42 = arith.mulf %27, %41 : vector<3x32x128xf32>
    %cst_14 = arith.constant 2.500000e-01 : f32
    %43 = vector.broadcast %cst_14 : f32 to vector<32x128xf32>
    %44 = arith.mulf %43, %7 : vector<32x128xf32>
    %cst_15 = arith.constant 1.000000e+00 : f32
    %45 = vector.broadcast %cst_15 : f32 to vector<32x128xf32>
    %46 = arith.subf %45, %7 : vector<32x128xf32>
    %cst_16 = arith.constant 7.500000e-01 : f32
    %47 = vector.broadcast %cst_16 : f32 to vector<32x128xf32>
    %48 = arith.mulf %47, %46 : vector<32x128xf32>
    %49 = arith.addf %44, %48 : vector<32x128xf32>
    %50 = vector.shape_cast %49 : vector<32x128xf32> to vector<1x32x128xf32>
    %51 = vector.broadcast %50 : vector<1x32x128xf32> to vector<3x32x128xf32>
    %52 = arith.mulf %51, %42 : vector<3x32x128xf32>
    %cst_17 = arith.constant 0.000000e+00 : f32
    %53 = vector.broadcast %cst_17 : f32 to vector<3x32x128xf32>
    %54 = arith.cmpf ogt, %4, %53 : vector<3x32x128xf32>
    %cst_18 = arith.constant 0.000000e+00 : f32
    %55 = vector.broadcast %cst_18 : f32 to vector<32x128xf32>
    %56 = arith.cmpf ogt, %7, %55 : vector<32x128xf32>
    %57 = vector.shape_cast %56 : vector<32x128xi1> to vector<1x32x128xi1>
    %58 = vector.broadcast %57 : vector<1x32x128xi1> to vector<3x32x128xi1>
    %59 = arith.andi %54, %58 : vector<3x32x128xi1>
    %60 = arith.extui %59 : vector<3x32x128xi1> to vector<3x32x128xi32>
    %61 = arith.sitofp %60 : vector<3x32x128xi32> to vector<3x32x128xf32>
    %62 = vector.shape_cast %56 : vector<32x128xi1> to vector<1x32x128xi1>
    %63 = vector.broadcast %62 : vector<1x32x128xi1> to vector<3x32x128xi1>
    %64 = arith.ori %54, %63 : vector<3x32x128xi1>
    %65 = arith.extui %64 : vector<3x32x128xi1> to vector<3x32x128xi32>
    %66 = arith.sitofp %65 : vector<3x32x128xi32> to vector<3x32x128xf32>
    %c0_19 = arith.constant 0 : index
    %c0_20 = arith.constant 0 : index
    %c0_21 = arith.constant 0 : index
    %c0_22 = arith.constant 0 : index
    %67 = vector.load %arg4[%c0_19, %c0_20, %c0_21, %c0_22] : memref<1x18x8x128xf32, #tpu.memory_space<vmem>>, vector<1x3x8x128xf32>
    %68 = vector.shape_cast %67 : vector<1x3x8x128xf32> to vector<3x8x128xf32>
    %69 = vector.extract_strided_slice %52 {offsets = [0, 0, 0], sizes = [3, 8, 128], strides = [1, 1, 1]} : vector<3x32x128xf32> to vector<3x8x128xf32>
    %70 = vector.extract_strided_slice %52 {offsets = [0, 8, 0], sizes = [3, 8, 128], strides = [1, 1, 1]} : vector<3x32x128xf32> to vector<3x8x128xf32>
    %71 = arith.addf %69, %70 : vector<3x8x128xf32>
    %72 = vector.extract_strided_slice %52 {offsets = [0, 16, 0], sizes = [3, 8, 128], strides = [1, 1, 1]} : vector<3x32x128xf32> to vector<3x8x128xf32>
    %73 = arith.addf %71, %72 : vector<3x8x128xf32>
    %74 = vector.extract_strided_slice %52 {offsets = [0, 24, 0], sizes = [3, 8, 128], strides = [1, 1, 1]} : vector<3x32x128xf32> to vector<3x8x128xf32>
    %75 = arith.addf %73, %74 : vector<3x8x128xf32>
    %76 = arith.addf %68, %75 : vector<3x8x128xf32>
    %c0_23 = arith.constant 0 : index
    %c0_24 = arith.constant 0 : index
    %c0_25 = arith.constant 0 : index
    %c0_26 = arith.constant 0 : index
    %77 = vector.load %arg4[%c0_23, %c0_24, %c0_25, %c0_26] : memref<1x18x8x128xf32, #tpu.memory_space<vmem>>, vector<1x3x8x128xf32>
    %78 = vector.shape_cast %77 : vector<1x3x8x128xf32> to vector<3x8x128xf32>
    %79 = vector.shape_cast %76 : vector<3x8x128xf32> to vector<1x3x8x128xf32>
    tpu.vector_store %arg4[%c0_23, %c0_24, %c0_25, %c0_26], %79 {strides = array<i32>} : memref<1x18x8x128xf32, #tpu.memory_space<vmem>>, vector<1x3x8x128xf32>,
    %c0_27 = arith.constant 0 : index
    %c3 = arith.constant 3 : index
    %c0_28 = arith.constant 0 : index
    %c0_29 = arith.constant 0 : index
    %80 = vector.load %arg4[%c0_27, %c3, %c0_28, %c0_29] : memref<1x18x8x128xf32, #tpu.memory_space<vmem>>, vector<1x3x8x128xf32>
    %81 = vector.shape_cast %80 : vector<1x3x8x128xf32> to vector<3x8x128xf32>
    %82 = vector.shape_cast %7 : vector<32x128xf32> to vector<1x32x128xf32>
    %83 = vector.broadcast %82 : vector<1x32x128xf32> to vector<3x32x128xf32>
    %84 = arith.mulf %19, %83 : vector<3x32x128xf32>
    %85 = vector.extract_strided_slice %84 {offsets = [0, 0, 0], sizes = [3, 8, 128], strides = [1, 1, 1]} : vector<3x32x128xf32> to vector<3x8x128xf32>
    %86 = vector.extract_strided_slice %84 {offsets = [0, 8, 0], sizes = [3, 8, 128], strides = [1, 1, 1]} : vector<3x32x128xf32> to vector<3x8x128xf32>
    %87 = arith.addf %85, %86 : vector<3x8x128xf32>
    %88 = vector.extract_strided_slice %84 {offsets = [0, 16, 0], sizes = [3, 8, 128], strides = [1, 1, 1]} : vector<3x32x128xf32> to vector<3x8x128xf32>
    %89 = arith.addf %87, %88 : vector<3x8x128xf32>
    %90 = vector.extract_strided_slice %84 {offsets = [0, 24, 0], sizes = [3, 8, 128], strides = [1, 1, 1]} : vector<3x32x128xf32> to vector<3x8x128xf32>
    %91 = arith.addf %89, %90 : vector<3x8x128xf32>
    %92 = arith.addf %81, %91 : vector<3x8x128xf32>
    %c0_30 = arith.constant 0 : index
    %c3_31 = arith.constant 3 : index
    %c0_32 = arith.constant 0 : index
    %c0_33 = arith.constant 0 : index
    %93 = vector.load %arg4[%c0_30, %c3_31, %c0_32, %c0_33] : memref<1x18x8x128xf32, #tpu.memory_space<vmem>>, vector<1x3x8x128xf32>
    %94 = vector.shape_cast %93 : vector<1x3x8x128xf32> to vector<3x8x128xf32>
    %95 = vector.shape_cast %92 : vector<3x8x128xf32> to vector<1x3x8x128xf32>
    tpu.vector_store %arg4[%c0_30, %c3_31, %c0_32, %c0_33], %95 {strides = array<i32>} : memref<1x18x8x128xf32, #tpu.memory_space<vmem>>, vector<1x3x8x128xf32>,
    %c0_34 = arith.constant 0 : index
    %c6 = arith.constant 6 : index
    %c0_35 = arith.constant 0 : index
    %c0_36 = arith.constant 0 : index
    %96 = vector.load %arg4[%c0_34, %c6, %c0_35, %c0_36] : memref<1x18x8x128xf32, #tpu.memory_space<vmem>>, vector<1x3x8x128xf32>
    %97 = vector.shape_cast %96 : vector<1x3x8x128xf32> to vector<3x8x128xf32>
    %98 = vector.extract_strided_slice %19 {offsets = [0, 0, 0], sizes = [3, 8, 128], strides = [1, 1, 1]} : vector<3x32x128xf32> to vector<3x8x128xf32>
    %99 = vector.extract_strided_slice %19 {offsets = [0, 8, 0], sizes = [3, 8, 128], strides = [1, 1, 1]} : vector<3x32x128xf32> to vector<3x8x128xf32>
    %100 = arith.addf %98, %99 : vector<3x8x128xf32>
    %101 = vector.extract_strided_slice %19 {offsets = [0, 16, 0], sizes = [3, 8, 128], strides = [1, 1, 1]} : vector<3x32x128xf32> to vector<3x8x128xf32>
    %102 = arith.addf %100, %101 : vector<3x8x128xf32>
    %103 = vector.extract_strided_slice %19 {offsets = [0, 24, 0], sizes = [3, 8, 128], strides = [1, 1, 1]} : vector<3x32x128xf32> to vector<3x8x128xf32>
    %104 = arith.addf %102, %103 : vector<3x8x128xf32>
    %105 = arith.addf %97, %104 : vector<3x8x128xf32>
    %c0_37 = arith.constant 0 : index
    %c6_38 = arith.constant 6 : index
    %c0_39 = arith.constant 0 : index
    %c0_40 = arith.constant 0 : index
    %106 = vector.load %arg4[%c0_37, %c6_38, %c0_39, %c0_40] : memref<1x18x8x128xf32, #tpu.memory_space<vmem>>, vector<1x3x8x128xf32>
    %107 = vector.shape_cast %106 : vector<1x3x8x128xf32> to vector<3x8x128xf32>
    %108 = vector.shape_cast %105 : vector<3x8x128xf32> to vector<1x3x8x128xf32>
    tpu.vector_store %arg4[%c0_37, %c6_38, %c0_39, %c0_40], %108 {strides = array<i32>} : memref<1x18x8x128xf32, #tpu.memory_space<vmem>>, vector<1x3x8x128xf32>,
    %c0_41 = arith.constant 0 : index
    %c9 = arith.constant 9 : index
    %c0_42 = arith.constant 0 : index
    %c0_43 = arith.constant 0 : index
    %109 = vector.load %arg4[%c0_41, %c9, %c0_42, %c0_43] : memref<1x18x8x128xf32, #tpu.memory_space<vmem>>, vector<1x3x8x128xf32>
    %110 = vector.shape_cast %109 : vector<1x3x8x128xf32> to vector<3x8x128xf32>
    %111 = vector.extract_strided_slice %7 {offsets = [0, 0], sizes = [8, 128], strides = [1, 1]} : vector<32x128xf32> to vector<8x128xf32>
    %112 = vector.extract_strided_slice %7 {offsets = [8, 0], sizes = [8, 128], strides = [1, 1]} : vector<32x128xf32> to vector<8x128xf32>
    %113 = arith.addf %111, %112 : vector<8x128xf32>
    %114 = vector.extract_strided_slice %7 {offsets = [16, 0], sizes = [8, 128], strides = [1, 1]} : vector<32x128xf32> to vector<8x128xf32>
    %115 = arith.addf %113, %114 : vector<8x128xf32>
    %116 = vector.extract_strided_slice %7 {offsets = [24, 0], sizes = [8, 128], strides = [1, 1]} : vector<32x128xf32> to vector<8x128xf32>
    %117 = arith.addf %115, %116 : vector<8x128xf32>
    %118 = vector.shape_cast %117 : vector<8x128xf32> to vector<1x8x128xf32>
    %119 = vector.broadcast %118 : vector<1x8x128xf32> to vector<3x8x128xf32>
    %120 = arith.addf %110, %119 : vector<3x8x128xf32>
    %c0_44 = arith.constant 0 : index
    %c9_45 = arith.constant 9 : index
    %c0_46 = arith.constant 0 : index
    %c0_47 = arith.constant 0 : index
    %121 = vector.load %arg4[%c0_44, %c9_45, %c0_46, %c0_47] : memref<1x18x8x128xf32, #tpu.memory_space<vmem>>, vector<1x3x8x128xf32>
    %122 = vector.shape_cast %121 : vector<1x3x8x128xf32> to vector<3x8x128xf32>
    %123 = vector.shape_cast %120 : vector<3x8x128xf32> to vector<1x3x8x128xf32>
    tpu.vector_store %arg4[%c0_44, %c9_45, %c0_46, %c0_47], %123 {strides = array<i32>} : memref<1x18x8x128xf32, #tpu.memory_space<vmem>>, vector<1x3x8x128xf32>,
    %c0_48 = arith.constant 0 : index
    %c12 = arith.constant 12 : index
    %c0_49 = arith.constant 0 : index
    %c0_50 = arith.constant 0 : index
    %124 = vector.load %arg4[%c0_48, %c12, %c0_49, %c0_50] : memref<1x18x8x128xf32, #tpu.memory_space<vmem>>, vector<1x3x8x128xf32>
    %125 = vector.shape_cast %124 : vector<1x3x8x128xf32> to vector<3x8x128xf32>
    %126 = vector.extract_strided_slice %61 {offsets = [0, 0, 0], sizes = [3, 8, 128], strides = [1, 1, 1]} : vector<3x32x128xf32> to vector<3x8x128xf32>
    %127 = vector.extract_strided_slice %61 {offsets = [0, 8, 0], sizes = [3, 8, 128], strides = [1, 1, 1]} : vector<3x32x128xf32> to vector<3x8x128xf32>
    %128 = arith.addf %126, %127 : vector<3x8x128xf32>
    %129 = vector.extract_strided_slice %61 {offsets = [0, 16, 0], sizes = [3, 8, 128], strides = [1, 1, 1]} : vector<3x32x128xf32> to vector<3x8x128xf32>
    %130 = arith.addf %128, %129 : vector<3x8x128xf32>
    %131 = vector.extract_strided_slice %61 {offsets = [0, 24, 0], sizes = [3, 8, 128], strides = [1, 1, 1]} : vector<3x32x128xf32> to vector<3x8x128xf32>
    %132 = arith.addf %130, %131 : vector<3x8x128xf32>
    %133 = arith.addf %125, %132 : vector<3x8x128xf32>
    %c0_51 = arith.constant 0 : index
    %c12_52 = arith.constant 12 : index
    %c0_53 = arith.constant 0 : index
    %c0_54 = arith.constant 0 : index
    %134 = vector.load %arg4[%c0_51, %c12_52, %c0_53, %c0_54] : memref<1x18x8x128xf32, #tpu.memory_space<vmem>>, vector<1x3x8x128xf32>
    %135 = vector.shape_cast %134 : vector<1x3x8x128xf32> to vector<3x8x128xf32>
    %136 = vector.shape_cast %133 : vector<3x8x128xf32> to vector<1x3x8x128xf32>
    tpu.vector_store %arg4[%c0_51, %c12_52, %c0_53, %c0_54], %136 {strides = array<i32>} : memref<1x18x8x128xf32, #tpu.memory_space<vmem>>, vector<1x3x8x128xf32>,
    %c0_55 = arith.constant 0 : index
    %c15 = arith.constant 15 : index
    %c0_56 = arith.constant 0 : index
    %c0_57 = arith.constant 0 : index
    %137 = vector.load %arg4[%c0_55, %c15, %c0_56, %c0_57] : memref<1x18x8x128xf32, #tpu.memory_space<vmem>>, vector<1x3x8x128xf32>
    %138 = vector.shape_cast %137 : vector<1x3x8x128xf32> to vector<3x8x128xf32>
    %139 = vector.extract_strided_slice %66 {offsets = [0, 0, 0], sizes = [3, 8, 128], strides = [1, 1, 1]} : vector<3x32x128xf32> to vector<3x8x128xf32>
    %140 = vector.extract_strided_slice %66 {offsets = [0, 8, 0], sizes = [3, 8, 128], strides = [1, 1, 1]} : vector<3x32x128xf32> to vector<3x8x128xf32>
    %141 = arith.addf %139, %140 : vector<3x8x128xf32>
    %142 = vector.extract_strided_slice %66 {offsets = [0, 16, 0], sizes = [3, 8, 128], strides = [1, 1, 1]} : vector<3x32x128xf32> to vector<3x8x128xf32>
    %143 = arith.addf %141, %142 : vector<3x8x128xf32>
    %144 = vector.extract_strided_slice %66 {offsets = [0, 24, 0], sizes = [3, 8, 128], strides = [1, 1, 1]} : vector<3x32x128xf32> to vector<3x8x128xf32>
    %145 = arith.addf %143, %144 : vector<3x8x128xf32>
    %146 = arith.addf %138, %145 : vector<3x8x128xf32>
    %c0_58 = arith.constant 0 : index
    %c15_59 = arith.constant 15 : index
    %c0_60 = arith.constant 0 : index
    %c0_61 = arith.constant 0 : index
    %147 = vector.load %arg4[%c0_58, %c15_59, %c0_60, %c0_61] : memref<1x18x8x128xf32, #tpu.memory_space<vmem>>, vector<1x3x8x128xf32>
    %148 = vector.shape_cast %147 : vector<1x3x8x128xf32> to vector<3x8x128xf32>
    %149 = vector.shape_cast %146 : vector<3x8x128xf32> to vector<1x3x8x128xf32>
    tpu.vector_store %arg4[%c0_58, %c15_59, %c0_60, %c0_61], %149 {strides = array<i32>} : memref<1x18x8x128xf32, #tpu.memory_space<vmem>>, vector<1x3x8x128xf32>,
    return
  }
  func.func @transform_0(%arg0: i32, %arg1: i32) -> (i32, i32, i32, i32) {
    %c0_i32 = arith.constant 0 : i32
    %c0_i32_0 = arith.constant 0 : i32
    %c0_i32_1 = arith.constant 0 : i32
    return %arg0, %c0_i32, %arg1, %c0_i32_0 : i32, i32, i32, i32
  }
  func.func @transform_1(%arg0: i32, %arg1: i32) -> (i32, i32, i32) {
    %c0_i32 = arith.constant 0 : i32
    %c0_i32_0 = arith.constant 0 : i32
    return %arg0, %arg1, %c0_i32 : i32, i32, i32
  }
  func.func @transform_2(%arg0: i32, %arg1: i32) -> (i32, i32, i32, i32) {
    %c0_i32 = arith.constant 0 : i32
    %c0_i32_0 = arith.constant 0 : i32
    %c0_i32_1 = arith.constant 0 : i32
    %c0_i32_2 = arith.constant 0 : i32
    return %arg0, %c0_i32, %c0_i32_0, %c0_i32_1 : i32, i32, i32, i32
  }
}

</mosaic_0001>

<llo_original>
// kernel: tpu_custom_call.1
$region0: #{tpu_custom_call.1}
  #allocation0 [shape = 'u32[]', space=smem, size = 0x4, offset = 0x4, fixed_abs, tag = 'smem constant byte address 0x4 - core index']
  #allocation1 [shape = 'u32[144,128]{1,0:T(1,128)}', space=vmem, size = 0x12000, scoped, tag = 'internal scratch']
  %s0 = inlined_call_operand.hbm [shape: f32[2,3,32,128], index: 0, kind: input, shape index: {}]
  %s1 = inlined_call_operand.hbm [shape: s8[2,32,128], index: 1, kind: input, shape index: {}]
  %s2 = inlined_call_operand.hbm [shape: f32[2,18,8,128], index: 2, kind: output, shape index: {}]
  %s3 = sld [smem:[#allocation0]]
  $region53: #{tpu_custom_call.1} parent=0
    _
  %s5 = ssub.s32 1, %s3
  %s6 = scalar_select 0, %s5, %s3
  $region1: #{tpu_custom_call.1} parent=0
    #allocation2 [shape = 'u8[98304]{0}', space=vmem, size = 0x18000, scoped, tag = 'input window, operand 0']
    #allocation3 [shape = 's32[2]{0}', space=sflag, size = 0x8, scoped, tag = 'scoped memory for tpu_custom_call.1']
    #allocation4 [shape = 's32[2]{0}', space=sflag, size = 0x8, scoped, tag = 'scoped memory for tpu_custom_call.1']
    #allocation5 [shape = 'u8[8192]{0}', space=vmem, size = 0x2000, scoped, tag = 'input window, operand 1']
    #allocation6 [shape = 's32[2]{0}', space=sflag, size = 0x8, scoped, tag = 'scoped memory for tpu_custom_call.1']
    #allocation7 [shape = 'u8[147456]{0}', space=vmem, size = 0x24000, scoped, tag = 'output window, operand 0']
    %7 = vsyncpa [#allocation3], 0
    %s8 = scalar_lea.sflag [#allocation3], 1
    %9 = vsyncpa %s8, 0
    %10 = vsyncpa [#allocation6], 0
    %s11 = scalar_lea.sflag [#allocation6], 1
    %12 = vsyncpa %s11, 0
    %13 = vsyncpa [#allocation4], 0
    %s14 = scalar_lea.sflag [#allocation4], 1
    %15 = vsyncpa %s14, 0
    loop: start=0, step=1, limit=4
    $region2: #{tpu_custom_call.1} parent=1 // loop_pre_header
      _
    $region3: #{tpu_custom_call.1} parent=1 // loop_header
      %s17 = sphi 0, %s21
      %p18 = scmp.ge.s32.totalorder %s17, 4
      %s24 = sphi 0, %s36
      %s25 = sphi 0, %s32
      %s26 = sphi 0, %s24
      %s27 = sphi 0, %s25
      %s28 = sphi 0, %s26
      %s29 = sphi 0, %s27
      %s41 = sphi 0, %s43
      %s44 = sphi 0, %s41
      %s45 = sphi 0, %s44
      %s61 = sphi 0, %s45
      %s69 = sphi 0, %s71
      %s72 = sphi 0, %s69
      %s73 = sphi 0, %s72
      %s89 = sphi 0, %s73
      %s95 = sphi 0, %s97
      %s98 = sphi 0, %s95
      %s99 = sphi 0, %s98
      %s115 = sphi 0, %s99
    $region4: #{tpu_custom_call.1} parent=1 // loop_header_branch
      %20 = sbr.rel (%p18) target = $region8
    $region5: #{tpu_custom_call.1} parent=1 // loop_body
      %s22 = ssub.s32 %s17, 1
      %s23 = ssub.s32 %s17, 2
      %s30 = sadd.s32 1, %s25
      %p31 = scmp.ge.s32.totalorder %s30, 1
      %s32 = scalar_select %p31, 0, %s30
      %s33 = sadd.s32 1, %s24
      %s34 = scalar_select %p31, %s33, %s24
      %p35 = scmp.ge.s32.totalorder %s34, 2
      %s36 = scalar_select %p35, 0, %s34
      %s37 = ssub.s32 %s24, %s36
      %s38 = ssub.s32 %s25, %s32
      %s39 = sor.u32 %s37, %s38
      %p40 = scmp.eq.s32.totalorder %s39, 0
      %s42 = sadd.s32 %s41, 1
      %s43 = scalar_select %p40, %s41, %s42
      %p46 = pneg %p40
      %p47 = scmp.eq.s32.totalorder %s17, 1
      %p48 = por %p46, %p47
      %p49 = scmp.ne.s32.totalorder %s41, %s44
      %p50 = scmp.eq.s32.totalorder %s17, 0
      %p51 = por %p49, %p50
      %p52 = scmp.ne.s32.totalorder %s41, %s44
      %p53 = scmp.eq.s32.totalorder %s22, 1
      %p54 = por %p52, %p53
      %p55 = scmp.ne.s32.totalorder %s44, %s45
      %p56 = scmp.eq.s32.totalorder %s22, 0
      %p57 = por %p55, %p56
      %p58 = scmp.ne.s32.totalorder %s44, %s45
      %p59 = scmp.eq.s32.totalorder %s23, 1
      %p60 = por %p58, %p59
      %p62 = scmp.ne.s32.totalorder %s45, %s61
      %p63 = scmp.eq.s32.totalorder %s23, 0
      %p64 = por %p62, %p63
      %s65 = ssub.s32 %s24, %s36
      %s66 = ssub.s32 %s25, %s32
      %s67 = sor.u32 %s65, %s66
      %p68 = scmp.eq.s32.totalorder %s67, 0
      %s70 = sadd.s32 %s69, 1
      %s71 = scalar_select %p68, %s69, %s70
      %p74 = pneg %p68
      %p75 = scmp.eq.s32.totalorder %s17, 1
      %p76 = por %p74, %p75
      %p77 = scmp.ne.s32.totalorder %s69, %s72
      %p78 = scmp.eq.s32.totalorder %s17, 0
      %p79 = por %p77, %p78
      %p80 = scmp.ne.s32.totalorder %s69, %s72
      %p81 = scmp.eq.s32.totalorder %s22, 1
      %p82 = por %p80, %p81
      %p83 = scmp.ne.s32.totalorder %s72, %s73
      %p84 = scmp.eq.s32.totalorder %s22, 0
      %p85 = por %p83, %p84
      %p86 = scmp.ne.s32.totalorder %s72, %s73
      %p87 = scmp.eq.s32.totalorder %s23, 1
      %p88 = por %p86, %p87
      %p90 = scmp.ne.s32.totalorder %s73, %s89
      %p91 = scmp.eq.s32.totalorder %s23, 0
      %p92 = por %p90, %p91
      %s93 = ssub.s32 %s24, %s36
      %p94 = scmp.eq.s32.totalorder %s93, 0
      %s96 = sadd.s32 %s95, 1
      %s97 = scalar_select %p94, %s95, %s96
      %p100 = pneg %p94
      %p101 = scmp.eq.s32.totalorder %s17, 1
      %p102 = por %p100, %p101
      %p103 = scmp.ne.s32.totalorder %s95, %s98
      %p104 = scmp.eq.s32.totalorder %s17, 0
      %p105 = por %p103, %p104
      %p106 = scmp.ne.s32.totalorder %s95, %s98
      %p107 = scmp.eq.s32.totalorder %s22, 1
      %p108 = por %p106, %p107
      %p109 = scmp.ne.s32.totalorder %s98, %s99
      %p110 = scmp.eq.s32.totalorder %s22, 0
      %p111 = por %p109, %p110
      %p112 = scmp.ne.s32.totalorder %s98, %s99
      %p113 = scmp.eq.s32.totalorder %s23, 1
      %p114 = por %p112, %p113
      %p116 = scmp.ne.s32.totalorder %s99, %s115
      %p117 = scmp.eq.s32.totalorder %s23, 0
      %p118 = por %p116, %p117
      %p119 = scmp.le.s32.totalorder 1, %s17
      %p120 = scmp.lt.s32.totalorder %s17, 3
      %p121 = pnand %p119, %p120
      %p122 = pneg %p121
      // Predicated region
      $region9: #{tpu_custom_call.1} parent=5 // pred_check
        _
      $region10: #{tpu_custom_call.1} parent=5 // pred_check_branch
        %124 = sbr.rel (%p121) target = $region12
      $region11: #{tpu_custom_call.1} parent=5 // pred_region
        %s125 = ssub.s32 %s17, 1
      $region12: #{tpu_custom_call.1} parent=5 // pred_fallthru
        _
      %p126 = scmp.lt.s32.totalorder %s17, 2
      // Predicated region
      $region13: #{tpu_custom_call.1} parent=5 // pred_check
        %p127 = pneg %p126
      $region14: #{tpu_custom_call.1} parent=5 // pred_check_branch
        %129 = sbr.rel (%p127) target = $region16
      $region15: #{tpu_custom_call.1} parent=5 // pred_region
        // Predicated region
        $region17: #{tpu_custom_call.1} parent=15 // pred_check
          %p130 = pneg %p51
        $region18: #{tpu_custom_call.1} parent=15 // pred_check_branch
          %132 = sbr.rel (%p130) target = $region20
        $region19: #{tpu_custom_call.1} parent=15 // pred_region
          %s133 = sand.u32 %s41, 1
          %s134 = scalar_lea.sflag [#allocation3], %s133
          %s135 = sand.u32 %s41, 1
          %s136 = smul.addr %s135, 96
          %s137 = scalar_lea.vmem [#allocation2], %s136
          %s138 = smul.u32 4, %s25
          %s140 = ssub.s32 1536, 1536
          %141 = vsyncadd %s134, %s140
          %s142 = smul.addr %s24, 12
          %s143 = sadd.s32 %s138, %s142
          %s144 = smul.addr %s143, 128
          %s145 = scalar_lea.hbm %s0, %s144
          %s146 = sshll.u32 %s137, 4
          %s147 = int_to_ptr.vmem [resolvable:$true] %s146
          %152 = dma.hbm_to_vmem [thread:$0]  %s145, 1536, %s147, %s134, 128, 128, 8
        $region20: #{tpu_custom_call.1} parent=15 // pred_fallthru
          _
        // Predicated region
        $region21: #{tpu_custom_call.1} parent=15 // pred_check
          %p153 = pneg %p79
        $region22: #{tpu_custom_call.1} parent=15 // pred_check_branch
          %155 = sbr.rel (%p153) target = $region24
        $region23: #{tpu_custom_call.1} parent=15 // pred_region
          %s156 = sand.u32 %s69, 1
          %s157 = scalar_lea.sflag [#allocation6], %s156
          %s158 = sand.u32 %s69, 1
          %s159 = smul.addr %s158, 8
          %s160 = scalar_lea.vmem [#allocation5], %s159
          %s162 = ssub.s32 128, 128
          %163 = vsyncadd %s157, %s162
          %s164 = sadd.s32 %s25, %s24
          %s165 = smul.addr %s164, 128
          %s166 = scalar_lea.hbm %s1, %s165
          %s168 = sshll.u32 %s160, 4
          %s169 = int_to_ptr.vmem [resolvable:$true] %s168
          %171 = dma.hbm_to_vmem [thread:$0]  %s166, 128, %s169, %s157
        $region24: #{tpu_custom_call.1} parent=15 // pred_fallthru
          _
      $region16: #{tpu_custom_call.1} parent=5 // pred_fallthru
        _
      %p172 = scmp.le.s32.totalorder 1, %s17
      %p173 = scmp.lt.s32.totalorder %s17, 3
      %p174 = pnand %p172, %p173
      %p175 = pneg %p174
      // Predicated region
      $region25: #{tpu_custom_call.1} parent=5 // pred_check
        _
      $region26: #{tpu_custom_call.1} parent=5 // pred_check_branch
        %177 = sbr.rel (%p174) target = $region28
      $region27: #{tpu_custom_call.1} parent=5 // pred_region
        %s178 = ssub.s32 %s17, 1
        %s179 = sand.u32 %s44, 1
        %s180 = scalar_lea.sflag [#allocation3], %s179
        %s181 = sand.u32 %s44, 1
        %s182 = smul.addr %s181, 96
        %s183 = scalar_lea.vmem [#allocation2], %s182
        // Predicated region
        $region29: #{tpu_custom_call.1} parent=27 // pred_check
          %p184 = pneg %p57
        $region30: #{tpu_custom_call.1} parent=27 // pred_check_branch
          %186 = sbr.rel (%p184) target = $region32
        $region31: #{tpu_custom_call.1} parent=27 // pred_region
          %187 = dma.done %s180, 1536
        $region32: #{tpu_custom_call.1} parent=27 // pred_fallthru
          _
        %s188 = sand.u32 %s72, 1
        %s189 = scalar_lea.sflag [#allocation6], %s188
        %s190 = sand.u32 %s72, 1
        %s191 = smul.addr %s190, 8
        %s192 = scalar_lea.vmem [#allocation5], %s191
        // Predicated region
        $region33: #{tpu_custom_call.1} parent=27 // pred_check
          %p193 = pneg %p85
        $region34: #{tpu_custom_call.1} parent=27 // pred_check_branch
          %195 = sbr.rel (%p193) target = $region36
        $region35: #{tpu_custom_call.1} parent=27 // pred_region
          %196 = dma.done %s189, 128
        $region36: #{tpu_custom_call.1} parent=27 // pred_fallthru
          _
        %s197 = sand.u32 %s44, 1
        %s198 = scalar_lea.sflag [#allocation3], %s197
        %s199 = sand.u32 %s44, 1
        %s200 = smul.addr %s199, 96
        %s201 = scalar_lea.vmem [#allocation2], %s200
        %p202 = pneg %p57
        %p203 = pneg %p54
        %s204 = sand.u32 %s72, 1
        %s205 = scalar_lea.sflag [#allocation6], %s204
        %s206 = sand.u32 %s72, 1
        %s207 = smul.addr %s206, 8
        %s208 = scalar_lea.vmem [#allocation5], %s207
        %p209 = pneg %p85
        %p210 = pneg %p82
        %p211 = pneg %p111
        %p212 = pneg %p108
        %s213 = sand.u32 %s98, 1
        %s214 = scalar_lea.sflag [#allocation4], %s213
        %s215 = sand.u32 %s98, 1
        %s216 = smul.addr %s215, 144
        %s217 = scalar_lea.vmem [#allocation7], %s216
        %s218 = smul.u32 4, %s27
        %p219 = scmp.eq.s32.totalorder %s27, 0
        // Predicated region
        $region37: #{tpu_custom_call.1} parent=27 // pred_check
          %p220 = pneg %p219
        $region38: #{tpu_custom_call.1} parent=27 // pred_check_branch
          %222 = sbr.rel (%p220) target = $region40
        $region39: #{tpu_custom_call.1} parent=27 // pred_region
          %223 = vst [vmem:[%s217] sm:$0xff] 0.0
          %224 = vst [vmem:[%s217 + $0x8] sm:$0xff] 0.0
          %225 = vst [vmem:[%s217 + $0x10] sm:$0xff] 0.0
          %226 = vst [vmem:[%s217 + $0x18] sm:$0xff] 0.0
          %227 = vst [vmem:[%s217 + $0x20] sm:$0xff] 0.0
          %228 = vst [vmem:[%s217 + $0x28] sm:$0xff] 0.0
          %229 = vst [vmem:[%s217 + $0x30] sm:$0xff] 0.0
          %230 = vst [vmem:[%s217 + $0x38] sm:$0xff] 0.0
          %231 = vst [vmem:[%s217 + $0x40] sm:$0xff] 0.0
          %232 = vst [vmem:[%s217 + $0x48] sm:$0xff] 0.0
          %233 = vst [vmem:[%s217 + $0x50] sm:$0xff] 0.0
          %234 = vst [vmem:[%s217 + $0x58] sm:$0xff] 0.0
          %235 = vst [vmem:[%s217 + $0x60] sm:$0xff] 0.0
          %236 = vst [vmem:[%s217 + $0x68] sm:$0xff] 0.0
          %237 = vst [vmem:[%s217 + $0x70] sm:$0xff] 0.0
          %238 = vst [vmem:[%s217 + $0x78] sm:$0xff] 0.0
          %239 = vst [vmem:[%s217 + $0x80] sm:$0xff] 0.0
          %240 = vst [vmem:[%s217 + $0x88] sm:$0xff] 0.0
        $region40: #{tpu_custom_call.1} parent=27 // pred_fallthru
          _
        %v241 = vld [vmem:[%s183] sm:$0xff]
        %v242 = vld [vmem:[%s183 + $0x8] sm:$0xff]
        %v243 = vld [vmem:[%s183 + $0x10] sm:$0xff]
        %v244 = vld [vmem:[%s183 + $0x18] sm:$0xff]
        %v245 = vld [vmem:[%s183 + $0x20] sm:$0xff]
        %v246 = vld [vmem:[%s183 + $0x28] sm:$0xff]
        %v247 = vld [vmem:[%s183 + $0x30] sm:$0xff]
        %v248 = vld [vmem:[%s183 + $0x38] sm:$0xff]
        %v249 = vld [vmem:[%s183 + $0x40] sm:$0xff]
        %v250 = vld [vmem:[%s183 + $0x48] sm:$0xff]
        %v251 = vld [vmem:[%s183 + $0x50] sm:$0xff]
        %v252 = vld [vmem:[%s183 + $0x58] sm:$0xff]
        %v253 = vld [vmem:[%s192] sm:$0xff]
        %v254 = vunpack.c.0.s8 %v253
        %v255 = vunpack.c.1.s8 %v253
        %v256 = vunpack.c.2.s8 %v253
        %v257 = vunpack.c.3.s8 %v253
        %v258 = vcvt.s32.f32 %v254
        %v259 = vcvt.s32.f32 %v255
        %v260 = vcvt.s32.f32 %v256
        %v261 = vcvt.s32.f32 %v257
        %v262 = vand.u32 2147483647, %v241
        %v263 = vand.u32 2147483647, %v242
        %v264 = vand.u32 2147483647, %v243
        %v265 = vand.u32 2147483647, %v244
        %v266 = vand.u32 2147483647, %v245
        %v267 = vand.u32 2147483647, %v246
        %v268 = vand.u32 2147483647, %v247
        %v269 = vand.u32 2147483647, %v248
        %v270 = vand.u32 2147483647, %v249
        %v271 = vand.u32 2147483647, %v250
        %v272 = vand.u32 2147483647, %v251
        %v273 = vand.u32 2147483647, %v252
        %v274 = vsub.f32 0.0, %v262
        %v275 = vsub.f32 0.0, %v263
        %v276 = vsub.f32 0.0, %v264
        %v277 = vsub.f32 0.0, %v265
        %v278 = vsub.f32 0.0, %v266
        %v279 = vsub.f32 0.0, %v267
        %v280 = vsub.f32 0.0, %v268
        %v281 = vsub.f32 0.0, %v269
        %v282 = vsub.f32 0.0, %v270
        %v283 = vsub.f32 0.0, %v271
        %v284 = vsub.f32 0.0, %v272
        %v285 = vsub.f32 0.0, %v273
        %v286 = vmul.f32 %v274, 1.442695
        %v287 = vpow.pop %v286
        %v288 = vmul.f32 %v275, 1.442695
        %v289 = vpow.pop %v288
        %v290 = vmul.f32 %v276, 1.442695
        %v291 = vpow.pop %v290
        %v292 = vmul.f32 %v277, 1.442695
        %v293 = vpow.pop %v292
        %v294 = vmul.f32 %v278, 1.442695
        %v295 = vpow.pop %v294
        %v296 = vmul.f32 %v279, 1.442695
        %v297 = vpow.pop %v296
        %v298 = vmul.f32 %v280, 1.442695
        %v299 = vpow.pop %v298
        %v300 = vmul.f32 %v281, 1.442695
        %v301 = vpow.pop %v300
        %v302 = vmul.f32 %v282, 1.442695
        %v303 = vpow.pop %v302
        %v304 = vmul.f32 %v283, 1.442695
        %v305 = vpow.pop %v304
        %v306 = vmul.f32 %v284, 1.442695
        %v307 = vpow.pop %v306
        %v308 = vmul.f32 %v285, 1.442695
        %v309 = vpow.pop %v308
        %v310 = vadd.f32 %v287, 1.0
        %v311 = vadd.f32 %v289, 1.0
        %v312 = vadd.f32 %v291, 1.0
        %v313 = vadd.f32 %v293, 1.0
        %v314 = vadd.f32 %v295, 1.0
        %v315 = vadd.f32 %v297, 1.0
        %v316 = vadd.f32 %v299, 1.0
        %v317 = vadd.f32 %v301, 1.0
        %v318 = vadd.f32 %v303, 1.0
        %v319 = vadd.f32 %v305, 1.0
        %v320 = vadd.f32 %v307, 1.0
        %v321 = vadd.f32 %v309, 1.0
        %v322 = vrcp.pop %v310
        %v323 = vmul.f32 1.0, %v322
        %v324 = vrcp.pop %v311
        %v325 = vmul.f32 1.0, %v324
        %v326 = vrcp.pop %v312
        %v327 = vmul.f32 1.0, %v326
        %v328 = vrcp.pop %v313
        %v329 = vmul.f32 1.0, %v328
        %v330 = vrcp.pop %v314
        %v331 = vmul.f32 1.0, %v330
        %v332 = vrcp.pop %v315
        %v333 = vmul.f32 1.0, %v332
        %v334 = vrcp.pop %v316
        %v335 = vmul.f32 1.0, %v334
        %v336 = vrcp.pop %v317
        %v337 = vmul.f32 1.0, %v336
        %v338 = vrcp.pop %v318
        %v339 = vmul.f32 1.0, %v338
        %v340 = vrcp.pop %v319
        %v341 = vmul.f32 1.0, %v340
        %v342 = vrcp.pop %v320
        %v343 = vmul.f32 1.0, %v342
        %v344 = vrcp.pop %v321
        %v345 = vmul.f32 1.0, %v344
        %vm346 = vcmp.ge.f32.partialorder %v241, 0.0
        %vm347 = vcmp.ge.f32.partialorder %v242, 0.0
        %vm348 = vcmp.ge.f32.partialorder %v243, 0.0
        %vm349 = vcmp.ge.f32.partialorder %v244, 0.0
        %vm350 = vcmp.ge.f32.partialorder %v245, 0.0
        %vm351 = vcmp.ge.f32.partialorder %v246, 0.0
        %vm352 = vcmp.ge.f32.partialorder %v247, 0.0
        %vm353 = vcmp.ge.f32.partialorder %v248, 0.0
        %vm354 = vcmp.ge.f32.partialorder %v249, 0.0
        %vm355 = vcmp.ge.f32.partialorder %v250, 0.0
        %vm356 = vcmp.ge.f32.partialorder %v251, 0.0
        %vm357 = vcmp.ge.f32.partialorder %v252, 0.0
        %v358 = vmul.f32 %v287, %v323
        %v359 = vmul.f32 %v289, %v325
        %v360 = vmul.f32 %v291, %v327
        %v361 = vmul.f32 %v293, %v329
        %v362 = vmul.f32 %v295, %v331
        %v363 = vmul.f32 %v297, %v333
        %v364 = vmul.f32 %v299, %v335
        %v365 = vmul.f32 %v301, %v337
        %v366 = vmul.f32 %v303, %v339
        %v367 = vmul.f32 %v305, %v341
        %v368 = vmul.f32 %v307, %v343
        %v369 = vmul.f32 %v309, %v345
        %v370 = vsel %vm346, %v323, %v358
        %v371 = vsel %vm347, %v325, %v359
        %v372 = vsel %vm348, %v327, %v360
        %v373 = vsel %vm349, %v329, %v361
        %v374 = vsel %vm350, %v331, %v362
        %v375 = vsel %vm351, %v333, %v363
        %v376 = vsel %vm352, %v335, %v364
        %v377 = vsel %vm353, %v337, %v365
        %v378 = vsel %vm354, %v339, %v366
        %v379 = vsel %vm355, %v341, %v367
        %v380 = vsel %vm356, %v343, %v368
        %v381 = vsel %vm357, %v345, %v369
        %v382 = vmax.f32 %v241, 0.0
        %v383 = vmax.f32 %v242, 0.0
        %v384 = vmax.f32 %v243, 0.0
        %v385 = vmax.f32 %v244, 0.0
        %v386 = vmax.f32 %v245, 0.0
        %v387 = vmax.f32 %v246, 0.0
        %v388 = vmax.f32 %v247, 0.0
        %v389 = vmax.f32 %v248, 0.0
        %v390 = vmax.f32 %v249, 0.0
        %v391 = vmax.f32 %v250, 0.0
        %v392 = vmax.f32 %v251, 0.0
        %v393 = vmax.f32 %v252, 0.0
        %v394 = vmul.f32 %v241, %v258
        %v395 = vmul.f32 %v242, %v259
        %v396 = vmul.f32 %v243, %v260
        %v397 = vmul.f32 %v244, %v261
        %v398 = vmul.f32 %v245, %v258
        %v399 = vmul.f32 %v246, %v259
        %v400 = vmul.f32 %v247, %v260
        %v401 = vmul.f32 %v248, %v261
        %v402 = vmul.f32 %v249, %v258
        %v403 = vmul.f32 %v250, %v259
        %v404 = vmul.f32 %v251, %v260
        %v405 = vmul.f32 %v252, %v261
        %v406 = vsub.f32 %v382, %v394
        %v407 = vsub.f32 %v383, %v395
        %v408 = vsub.f32 %v384, %v396
        %v409 = vsub.f32 %v385, %v397
        %v410 = vsub.f32 %v386, %v398
        %v411 = vsub.f32 %v387, %v399
        %v412 = vsub.f32 %v388, %v400
        %v413 = vsub.f32 %v389, %v401
        %v414 = vsub.f32 %v390, %v402
        %v415 = vsub.f32 %v391, %v403
        %v416 = vsub.f32 %v392, %v404
        %v417 = vsub.f32 %v393, %v405
        %v418 = vadd.f32 %v287, 1.0
        %v419 = vlog2.pop %v418
        %v420 = vmul.f32 %v419, 0.6931472
        %v421 = vmul.f32 -0.5, %v287
        %v422 = vadd.f32 %v421, 1.0
        %v423 = vmul.f32 %v422, %v287
        %v424 = vand.u32 2147483647, %v287
        %vm425 = vcmp.lt.f32.partialorder %v424, 0.0004427343
        %v426 = vsel %vm425, %v423, %v420
        %v427 = vadd.f32 %v289, 1.0
        %v428 = vlog2.pop %v427
        %v429 = vmul.f32 %v428, 0.6931472
        %v430 = vmul.f32 -0.5, %v289
        %v431 = vadd.f32 %v430, 1.0
        %v432 = vmul.f32 %v431, %v289
        %v433 = vand.u32 2147483647, %v289
        %vm434 = vcmp.lt.f32.partialorder %v433, 0.0004427343
        %v435 = vsel %vm434, %v432, %v429
        %v436 = vadd.f32 %v291, 1.0
        %v437 = vlog2.pop %v436
        %v438 = vmul.f32 %v437, 0.6931472
        %v439 = vmul.f32 -0.5, %v291
        %v440 = vadd.f32 %v439, 1.0
        %v441 = vmul.f32 %v440, %v291
        %v442 = vand.u32 2147483647, %v291
        %vm443 = vcmp.lt.f32.partialorder %v442, 0.0004427343
        %v444 = vsel %vm443, %v441, %v438
        %v445 = vadd.f32 %v293, 1.0
        %v446 = vlog2.pop %v445
        %v447 = vmul.f32 %v446, 0.6931472
        %v448 = vmul.f32 -0.5, %v293
        %v449 = vadd.f32 %v448, 1.0
        %v450 = vmul.f32 %v449, %v293
        %v451 = vand.u32 2147483647, %v293
        %vm452 = vcmp.lt.f32.partialorder %v451, 0.0004427343
        %v453 = vsel %vm452, %v450, %v447
        %v454 = vadd.f32 %v295, 1.0
        %v455 = vlog2.pop %v454
        %v456 = vmul.f32 %v455, 0.6931472
        %v457 = vmul.f32 -0.5, %v295
        %v458 = vadd.f32 %v457, 1.0
        %v459 = vmul.f32 %v458, %v295
        %v460 = vand.u32 2147483647, %v295
        %vm461 = vcmp.lt.f32.partialorder %v460, 0.0004427343
        %v462 = vsel %vm461, %v459, %v456
        %v463 = vadd.f32 %v297, 1.0
        %v464 = vlog2.pop %v463
        %v465 = vmul.f32 %v464, 0.6931472
        %v466 = vmul.f32 -0.5, %v297
        %v467 = vadd.f32 %v466, 1.0
        %v468 = vmul.f32 %v467, %v297
        %v469 = vand.u32 2147483647, %v297
        %vm470 = vcmp.lt.f32.partialorder %v469, 0.0004427343
        %v471 = vsel %vm470, %v468, %v465
        %v472 = vadd.f32 %v299, 1.0
        %v473 = vlog2.pop %v472
        %v474 = vmul.f32 %v473, 0.6931472
        %v475 = vmul.f32 -0.5, %v299
        %v476 = vadd.f32 %v475, 1.0
        %v477 = vmul.f32 %v476, %v299
        %v478 = vand.u32 2147483647, %v299
        %vm479 = vcmp.lt.f32.partialorder %v478, 0.0004427343
        %v480 = vsel %vm479, %v477, %v474
        %v481 = vadd.f32 %v301, 1.0
        %v482 = vlog2.pop %v481
        %v483 = vmul.f32 %v482, 0.6931472
        %v484 = vmul.f32 -0.5, %v301
        %v485 = vadd.f32 %v484, 1.0
        %v486 = vmul.f32 %v485, %v301
        %v487 = vand.u32 2147483647, %v301
        %vm488 = vcmp.lt.f32.partialorder %v487, 0.0004427343
        %v489 = vsel %vm488, %v486, %v483
        %v490 = vadd.f32 %v303, 1.0
        %v491 = vlog2.pop %v490
        %v492 = vmul.f32 %v491, 0.6931472
        %v493 = vmul.f32 -0.5, %v303
        %v494 = vadd.f32 %v493, 1.0
        %v495 = vmul.f32 %v494, %v303
        %v496 = vand.u32 2147483647, %v303
        %vm497 = vcmp.lt.f32.partialorder %v496, 0.0004427343
        %v498 = vsel %vm497, %v495, %v492
        %v499 = vadd.f32 %v305, 1.0
        %v500 = vlog2.pop %v499
        %v501 = vmul.f32 %v500, 0.6931472
        %v502 = vmul.f32 -0.5, %v305
        %v503 = vadd.f32 %v502, 1.0
        %v504 = vmul.f32 %v503, %v305
        %v505 = vand.u32 2147483647, %v305
        %vm506 = vcmp.lt.f32.partialorder %v505, 0.0004427343
        %v507 = vsel %vm506, %v504, %v501
        %v508 = vadd.f32 %v307, 1.0
        %v509 = vlog2.pop %v508
        %v510 = vmul.f32 %v509, 0.6931472
        %v511 = vmul.f32 -0.5, %v307
        %v512 = vadd.f32 %v511, 1.0
        %v513 = vmul.f32 %v512, %v307
        %v514 = vand.u32 2147483647, %v307
        %vm515 = vcmp.lt.f32.partialorder %v514, 0.0004427343
        %v516 = vsel %vm515, %v513, %v510
        %v517 = vadd.f32 %v309, 1.0
        %v518 = vlog2.pop %v517
        %v519 = vmul.f32 %v518, 0.6931472
        %v520 = vmul.f32 -0.5, %v309
        %v521 = vadd.f32 %v520, 1.0
        %v522 = vmul.f32 %v521, %v309
        %v523 = vand.u32 2147483647, %v309
        %vm524 = vcmp.lt.f32.partialorder %v523, 0.0004427343
        %v525 = vsel %vm524, %v522, %v519
        %v526 = vadd.f32 %v406, %v426
        %v527 = vadd.f32 %v407, %v435
        %v528 = vadd.f32 %v408, %v444
        %v529 = vadd.f32 %v409, %v453
        %v530 = vadd.f32 %v410, %v462
        %v531 = vadd.f32 %v411, %v471
        %v532 = vadd.f32 %v412, %v480
        %v533 = vadd.f32 %v413, %v489
        %v534 = vadd.f32 %v414, %v498
        %v535 = vadd.f32 %v415, %v507
        %v536 = vadd.f32 %v416, %v516
        %v537 = vadd.f32 %v417, %v525
        %v538 = vmul.f32 %v370, %v258
        %v539 = vmul.f32 %v371, %v259
        %v540 = vmul.f32 %v372, %v260
        %v541 = vmul.f32 %v373, %v261
        %v542 = vmul.f32 %v374, %v258
        %v543 = vmul.f32 %v375, %v259
        %v544 = vmul.f32 %v376, %v260
        %v545 = vmul.f32 %v377, %v261
        %v546 = vmul.f32 %v378, %v258
        %v547 = vmul.f32 %v379, %v259
        %v548 = vmul.f32 %v380, %v260
        %v549 = vmul.f32 %v381, %v261
        %v550 = vsub.f32 1.0, %v370
        %v551 = vsub.f32 1.0, %v371
        %v552 = vsub.f32 1.0, %v372
        %v553 = vsub.f32 1.0, %v373
        %v554 = vsub.f32 1.0, %v374
        %v555 = vsub.f32 1.0, %v375
        %v556 = vsub.f32 1.0, %v376
        %v557 = vsub.f32 1.0, %v377
        %v558 = vsub.f32 1.0, %v378
        %v559 = vsub.f32 1.0, %v379
        %v560 = vsub.f32 1.0, %v380
        %v561 = vsub.f32 1.0, %v381
        %v562 = vsub.f32 1.0, %v258
        %v563 = vsub.f32 1.0, %v259
        %v564 = vsub.f32 1.0, %v260
        %v565 = vsub.f32 1.0, %v261
        %v566 = vmul.f32 %v550, %v562
        %v567 = vmul.f32 %v551, %v563
        %v568 = vmul.f32 %v552, %v564
        %v569 = vmul.f32 %v553, %v565
        %v570 = vmul.f32 %v554, %v562
        %v571 = vmul.f32 %v555, %v563
        %v572 = vmul.f32 %v556, %v564
        %v573 = vmul.f32 %v557, %v565
        %v574 = vmul.f32 %v558, %v562
        %v575 = vmul.f32 %v559, %v563
        %v576 = vmul.f32 %v560, %v564
        %v577 = vmul.f32 %v561, %v565
        %v578 = vadd.f32 %v538, %v566
        %v579 = vadd.f32 %v539, %v567
        %v580 = vadd.f32 %v540, %v568
        %v581 = vadd.f32 %v541, %v569
        %v582 = vadd.f32 %v542, %v570
        %v583 = vadd.f32 %v543, %v571
        %v584 = vadd.f32 %v544, %v572
        %v585 = vadd.f32 %v545, %v573
        %v586 = vadd.f32 %v546, %v574
        %v587 = vadd.f32 %v547, %v575
        %v588 = vadd.f32 %v548, %v576
        %v589 = vadd.f32 %v549, %v577
        %v590 = vsub.f32 1.0, %v578
        %v591 = vsub.f32 1.0, %v579
        %v592 = vsub.f32 1.0, %v580
        %v593 = vsub.f32 1.0, %v581
        %v594 = vsub.f32 1.0, %v582
        %v595 = vsub.f32 1.0, %v583
        %v596 = vsub.f32 1.0, %v584
        %v597 = vsub.f32 1.0, %v585
        %v598 = vsub.f32 1.0, %v586
        %v599 = vsub.f32 1.0, %v587
        %v600 = vsub.f32 1.0, %v588
        %v601 = vsub.f32 1.0, %v589
        %v602 = vmul.f32 %v590, %v590
        %v603 = vmul.f32 %v591, %v591
        %v604 = vmul.f32 %v592, %v592
        %v605 = vmul.f32 %v593, %v593
        %v606 = vmul.f32 %v594, %v594
        %v607 = vmul.f32 %v595, %v595
        %v608 = vmul.f32 %v596, %v596
        %v609 = vmul.f32 %v597, %v597
        %v610 = vmul.f32 %v598, %v598
        %v611 = vmul.f32 %v599, %v599
        %v612 = vmul.f32 %v600, %v600
        %v613 = vmul.f32 %v601, %v601
        %v614 = vmul.f32 %v526, %v602
        %v615 = vmul.f32 %v527, %v603
        %v616 = vmul.f32 %v528, %v604
        %v617 = vmul.f32 %v529, %v605
        %v618 = vmul.f32 %v530, %v606
        %v619 = vmul.f32 %v531, %v607
        %v620 = vmul.f32 %v532, %v608
        %v621 = vmul.f32 %v533, %v609
        %v622 = vmul.f32 %v534, %v610
        %v623 = vmul.f32 %v535, %v611
        %v624 = vmul.f32 %v536, %v612
        %v625 = vmul.f32 %v537, %v613
        %v626 = vmul.f32 %v258, 0.25
        %v627 = vmul.f32 %v259, 0.25
        %v628 = vmul.f32 %v260, 0.25
        %v629 = vmul.f32 %v261, 0.25
        %v630 = vmul.f32 %v562, 0.75
        %v631 = vmul.f32 %v563, 0.75
        %v632 = vmul.f32 %v564, 0.75
        %v633 = vmul.f32 %v565, 0.75
        %v634 = vadd.f32 %v626, %v630
        %v635 = vadd.f32 %v627, %v631
        %v636 = vadd.f32 %v628, %v632
        %v637 = vadd.f32 %v629, %v633
        %v638 = vmul.f32 %v634, %v614
        %v639 = vmul.f32 %v635, %v615
        %v640 = vmul.f32 %v636, %v616
        %v641 = vmul.f32 %v637, %v617
        %v642 = vmul.f32 %v634, %v618
        %v643 = vmul.f32 %v635, %v619
        %v644 = vmul.f32 %v636, %v620
        %v645 = vmul.f32 %v637, %v621
        %v646 = vmul.f32 %v634, %v622
        %v647 = vmul.f32 %v635, %v623
        %v648 = vmul.f32 %v636, %v624
        %v649 = vmul.f32 %v637, %v625
        %vm650 = vcmp.gt.f32.partialorder %v241, 0.0
        %vm651 = vcmp.gt.f32.partialorder %v242, 0.0
        %vm652 = vcmp.gt.f32.partialorder %v243, 0.0
        %vm653 = vcmp.gt.f32.partialorder %v244, 0.0
        %vm654 = vcmp.gt.f32.partialorder %v245, 0.0
        %vm655 = vcmp.gt.f32.partialorder %v246, 0.0
        %vm656 = vcmp.gt.f32.partialorder %v247, 0.0
        %vm657 = vcmp.gt.f32.partialorder %v248, 0.0
        %vm658 = vcmp.gt.f32.partialorder %v249, 0.0
        %vm659 = vcmp.gt.f32.partialorder %v250, 0.0
        %vm660 = vcmp.gt.f32.partialorder %v251, 0.0
        %vm661 = vcmp.gt.f32.partialorder %v252, 0.0
        %vm662 = vcmp.gt.f32.partialorder %v258, 0.0
        %vm663 = vcmp.gt.f32.partialorder %v259, 0.0
        %vm664 = vcmp.gt.f32.partialorder %v260, 0.0
        %vm665 = vcmp.gt.f32.partialorder %v261, 0.0
        %v666 = vsel %vm662, 1, 0
        %v667 = vsel %vm663, 1, 0
        %v668 = vsel %vm664, 1, 0
        %v669 = vsel %vm665, 1, 0
        %vm670 = vcmp.eq.s32.totalorder %v666, 1
        %vm671 = vcmp.eq.s32.totalorder %v667, 1
        %vm672 = vcmp.eq.s32.totalorder %v668, 1
        %vm673 = vcmp.eq.s32.totalorder %v669, 1
        %vm674 = vmand %vm650, %vm670
        %vm675 = vmand %vm651, %vm671
        %vm676 = vmand %vm652, %vm672
        %vm677 = vmand %vm653, %vm673
        %vm678 = vmand %vm654, %vm670
        %vm679 = vmand %vm655, %vm671
        %vm680 = vmand %vm656, %vm672
        %vm681 = vmand %vm657, %vm673
        %vm682 = vmand %vm658, %vm670
        %vm683 = vmand %vm659, %vm671
        %vm684 = vmand %vm660, %vm672
        %vm685 = vmand %vm661, %vm673
        %v686 = vsel %vm674, 1, 0
        %v687 = vsel %vm675, 1, 0
        %v688 = vsel %vm676, 1, 0
        %v689 = vsel %vm677, 1, 0
        %v690 = vsel %vm678, 1, 0
        %v691 = vsel %vm679, 1, 0
        %v692 = vsel %vm680, 1, 0
        %v693 = vsel %vm681, 1, 0
        %v694 = vsel %vm682, 1, 0
        %v695 = vsel %vm683, 1, 0
        %v696 = vsel %vm684, 1, 0
        %v697 = vsel %vm685, 1, 0
        %v698 = vcvt.s32.f32 %v686
        %v699 = vcvt.s32.f32 %v687
        %v700 = vcvt.s32.f32 %v688
        %v701 = vcvt.s32.f32 %v689
        %v702 = vcvt.s32.f32 %v690
        %v703 = vcvt.s32.f32 %v691
        %v704 = vcvt.s32.f32 %v692
        %v705 = vcvt.s32.f32 %v693
        %v706 = vcvt.s32.f32 %v694
        %v707 = vcvt.s32.f32 %v695
        %v708 = vcvt.s32.f32 %v696
        %v709 = vcvt.s32.f32 %v697
        %vm710 = vmor %vm650, %vm670
        %vm711 = vmor %vm651, %vm671
        %vm712 = vmor %vm652, %vm672
        %vm713 = vmor %vm653, %vm673
        %vm714 = vmor %vm654, %vm670
        %vm715 = vmor %vm655, %vm671
        %vm716 = vmor %vm656, %vm672
        %vm717 = vmor %vm657, %vm673
        %vm718 = vmor %vm658, %vm670
        %vm719 = vmor %vm659, %vm671
        %vm720 = vmor %vm660, %vm672
        %vm721 = vmor %vm661, %vm673
        %v722 = vsel %vm710, 1, 0
        %v723 = vsel %vm711, 1, 0
        %v724 = vsel %vm712, 1, 0
        %v725 = vsel %vm713, 1, 0
        %v726 = vsel %vm714, 1, 0
        %v727 = vsel %vm715, 1, 0
        %v728 = vsel %vm716, 1, 0
        %v729 = vsel %vm717, 1, 0
        %v730 = vsel %vm718, 1, 0
        %v731 = vsel %vm719, 1, 0
        %v732 = vsel %vm720, 1, 0
        %v733 = vsel %vm721, 1, 0
        %v734 = vcvt.s32.f32 %v722
        %v735 = vcvt.s32.f32 %v723
        %v736 = vcvt.s32.f32 %v724
        %v737 = vcvt.s32.f32 %v725
        %v738 = vcvt.s32.f32 %v726
        %v739 = vcvt.s32.f32 %v727
        %v740 = vcvt.s32.f32 %v728
        %v741 = vcvt.s32.f32 %v729
        %v742 = vcvt.s32.f32 %v730
        %v743 = vcvt.s32.f32 %v731
        %v744 = vcvt.s32.f32 %v732
        %v745 = vcvt.s32.f32 %v733
        %v746 = vld [vmem:[%s217] sm:$0xff]
        %v747 = vld [vmem:[%s217 + $0x8] sm:$0xff]
        %v748 = vld [vmem:[%s217 + $0x10] sm:$0xff]
        %v749 = vadd.f32 %v638, %v639
        %v750 = vadd.f32 %v642, %v643
        %v751 = vadd.f32 %v646, %v647
        %v752 = vadd.f32 %v749, %v640
        %v753 = vadd.f32 %v750, %v644
        %v754 = vadd.f32 %v751, %v648
        %v755 = vadd.f32 %v752, %v641
        %v756 = vadd.f32 %v753, %v645
        %v757 = vadd.f32 %v754, %v649
        %v758 = vadd.f32 %v746, %v755
        %v759 = vadd.f32 %v747, %v756
        %v760 = vadd.f32 %v748, %v757
        %761 = vst [vmem:[%s217] sm:$0xff] %v758
        %762 = vst [vmem:[%s217 + $0x8] sm:$0xff] %v759
        %763 = vst [vmem:[%s217 + $0x10] sm:$0xff] %v760
        %s764 = scalar_lea.vmem %s217, 24 [#allocation7]
        %v765 = vld [vmem:[%s764] sm:$0xff]
        %v766 = vld [vmem:[%s764 + $0x8] sm:$0xff]
        %v767 = vld [vmem:[%s764 + $0x10] sm:$0xff]
        %v768 = vadd.f32 %v538, %v539
        %v769 = vadd.f32 %v542, %v543
        %v770 = vadd.f32 %v546, %v547
        %v771 = vadd.f32 %v768, %v540
        %v772 = vadd.f32 %v769, %v544
        %v773 = vadd.f32 %v770, %v548
        %v774 = vadd.f32 %v771, %v541
        %v775 = vadd.f32 %v772, %v545
        %v776 = vadd.f32 %v773, %v549
        %v777 = vadd.f32 %v765, %v774
        %v778 = vadd.f32 %v766, %v775
        %v779 = vadd.f32 %v767, %v776
        %780 = vst [vmem:[%s764] sm:$0xff] %v777
        %781 = vst [vmem:[%s764 + $0x8] sm:$0xff] %v778
        %782 = vst [vmem:[%s764 + $0x10] sm:$0xff] %v779
        %s783 = scalar_lea.vmem %s217, 48 [#allocation7]
        %v784 = vld [vmem:[%s783] sm:$0xff]
        %v785 = vld [vmem:[%s783 + $0x8] sm:$0xff]
        %v786 = vld [vmem:[%s783 + $0x10] sm:$0xff]
        %v787 = vadd.f32 %v370, %v371
        %v788 = vadd.f32 %v374, %v375
        %v789 = vadd.f32 %v378, %v379
        %v790 = vadd.f32 %v787, %v372
        %v791 = vadd.f32 %v788, %v376
        %v792 = vadd.f32 %v789, %v380
        %v793 = vadd.f32 %v790, %v373
        %v794 = vadd.f32 %v791, %v377
        %v795 = vadd.f32 %v792, %v381
        %v796 = vadd.f32 %v784, %v793
        %v797 = vadd.f32 %v785, %v794
        %v798 = vadd.f32 %v786, %v795
        %799 = vst [vmem:[%s783] sm:$0xff] %v796
        %800 = vst [vmem:[%s783 + $0x8] sm:$0xff] %v797
        %801 = vst [vmem:[%s783 + $0x10] sm:$0xff] %v798
        %s802 = scalar_lea.vmem %s217, 72 [#allocation7]
        %v803 = vld [vmem:[%s802] sm:$0xff]
        %v804 = vld [vmem:[%s802 + $0x8] sm:$0xff]
        %v805 = vld [vmem:[%s802 + $0x10] sm:$0xff]
        %v806 = vadd.f32 %v258, %v259
        %v807 = vadd.f32 %v806, %v260
        %v808 = vadd.f32 %v807, %v261
        %v809 = vadd.f32 %v803, %v808
        %v810 = vadd.f32 %v804, %v808
        %v811 = vadd.f32 %v805, %v808
        %812 = vst [vmem:[%s802] sm:$0xff] %v809
        %813 = vst [vmem:[%s802 + $0x8] sm:$0xff] %v810
        %814 = vst [vmem:[%s802 + $0x10] sm:$0xff] %v811
        %s815 = scalar_lea.vmem %s217, 96 [#allocation7]
        %v816 = vld [vmem:[%s815] sm:$0xff]
        %v817 = vld [vmem:[%s815 + $0x8] sm:$0xff]
        %v818 = vld [vmem:[%s815 + $0x10] sm:$0xff]
        %v819 = vadd.f32 %v698, %v699
        %v820 = vadd.f32 %v702, %v703
        %v821 = vadd.f32 %v706, %v707
        %v822 = vadd.f32 %v819, %v700
        %v823 = vadd.f32 %v820, %v704
        %v824 = vadd.f32 %v821, %v708
        %v825 = vadd.f32 %v822, %v701
        %v826 = vadd.f32 %v823, %v705
        %v827 = vadd.f32 %v824, %v709
        %v828 = vadd.f32 %v816, %v825
        %v829 = vadd.f32 %v817, %v826
        %v830 = vadd.f32 %v818, %v827
        %831 = vst [vmem:[%s815] sm:$0xff] %v828
        %832 = vst [vmem:[%s815 + $0x8] sm:$0xff] %v829
        %833 = vst [vmem:[%s815 + $0x10] sm:$0xff] %v830
        %s834 = scalar_lea.vmem %s217, 120 [#allocation7]
        %v835 = vld [vmem:[%s834] sm:$0xff]
        %v836 = vld [vmem:[%s834 + $0x8] sm:$0xff]
        %v837 = vld [vmem:[%s834 + $0x10] sm:$0xff]
        %v838 = vadd.f32 %v734, %v735
        %v839 = vadd.f32 %v738, %v739
        %v840 = vadd.f32 %v742, %v743
        %v841 = vadd.f32 %v838, %v736
        %v842 = vadd.f32 %v839, %v740
        %v843 = vadd.f32 %v840, %v744
        %v844 = vadd.f32 %v841, %v737
        %v845 = vadd.f32 %v842, %v741
        %v846 = vadd.f32 %v843, %v745
        %v847 = vadd.f32 %v835, %v844
        %v848 = vadd.f32 %v836, %v845
        %v849 = vadd.f32 %v837, %v846
        %850 = vst [vmem:[%s834] sm:$0xff] %v847
        %851 = vst [vmem:[%s834 + $0x8] sm:$0xff] %v848
        %852 = vst [vmem:[%s834 + $0x10] sm:$0xff] %v849
        %s853 = sand.u32 %s98, 1
        %s854 = scalar_lea.sflag [#allocation4], %s853
        %s855 = sand.u32 %s98, 1
        %s856 = smul.addr %s855, 144
        %s857 = scalar_lea.vmem [#allocation7], %s856
        // Predicated region
        $region41: #{tpu_custom_call.1} parent=27 // pred_check
          %p858 = pneg %p108
        $region42: #{tpu_custom_call.1} parent=27 // pred_check_branch
          %860 = sbr.rel (%p858) target = $region44
        $region43: #{tpu_custom_call.1} parent=27 // pred_region
          %s862 = ssub.s32 2304, 2304
          %863 = vsyncadd %s854, %s862
          %s864 = smul.addr %s26, 18
          %s865 = smul.addr %s864, 128
          %s866 = scalar_lea.hbm %s2, %s865
          %s867 = sshll.u32 %s857, 4
          %s868 = int_to_ptr.vmem [resolvable:$true] %s867
          %873 = dma.vmem_to_hbm [thread:$0]  %s868, 2304, %s866, %s854, 128, 128, 8
        $region44: #{tpu_custom_call.1} parent=27 // pred_fallthru
          _
      $region28: #{tpu_custom_call.1} parent=5 // pred_fallthru
        _
      %p874 = scmp.le.s32.totalorder 2, %s17
      // Predicated region
      $region45: #{tpu_custom_call.1} parent=5 // pred_check
        %p875 = pneg %p874
      $region46: #{tpu_custom_call.1} parent=5 // pred_check_branch
        %877 = sbr.rel (%p875) target = $region48
      $region47: #{tpu_custom_call.1} parent=5 // pred_region
        %s878 = ssub.s32 %s17, 2
        // Predicated region
        $region49: #{tpu_custom_call.1} parent=47 // pred_check
          %p879 = pneg %p114
        $region50: #{tpu_custom_call.1} parent=47 // pred_check_branch
          %881 = sbr.rel (%p879) target = $region52
        $region51: #{tpu_custom_call.1} parent=47 // pred_region
          %s882 = sand.u32 %s99, 1
          %s883 = scalar_lea.sflag [#allocation4], %s882
          %s884 = sand.u32 %s99, 1
          %s885 = smul.addr %s884, 144
          %s886 = scalar_lea.vmem [#allocation7], %s885
          %887 = dma.done %s883, 2304
        $region52: #{tpu_custom_call.1} parent=47 // pred_fallthru
          _
      $region48: #{tpu_custom_call.1} parent=5 // pred_fallthru
        _
    $region6: #{tpu_custom_call.1} parent=1 // loop_footer
      %s21 = sadd.s32 1, %s17
    $region7: #{tpu_custom_call.1} parent=1 // loop_footer_branch
      %16 = sbr.rel target = $region3
    $region8: #{tpu_custom_call.1} parent=1 // loop_exit
      _
    %888 = vsyncpa [#allocation3], 1
    %s889 = scalar_lea.sflag [#allocation3], 1
    %890 = vsyncpa %s889, 1
    %891 = vsyncpa [#allocation6], 1
    %s892 = scalar_lea.sflag [#allocation6], 1
    %893 = vsyncpa %s892, 1
    %894 = vsyncpa [#allocation4], 1
    %s895 = scalar_lea.sflag [#allocation4], 1
    %896 = vsyncpa %s895, 1

</llo_original>
